<compile_context>
chip_gen: v7x
topology: tpu7x:2x2x1
jax: 0.10.0
libtpu: 0.0.40
codegen_flags: <defaults>
</compile_context>

<pallas_src>
import functools

import jax
import jax.numpy as jnp
from jax.experimental import pallas as pl
from jax.experimental.pallas import tpu as pltpu


def _pair_norm_kernel(x_ref, o_ref, col_ref, sqcol_ref, inv_ref, *, n_rows, ragged):
    phase = pl.program_id(0)          # 0 = stats pass, 1 = normalize pass
    t = pl.program_id(1)              # row-tile index
    nt = pl.num_programs(1)
    tm = x_ref.shape[0]               # row-tile size (static)

    @pl.when(jnp.logical_and(phase == 0, t == 0))
    def _zero():
        col_ref[...] = jnp.zeros_like(col_ref)
        sqcol_ref[...] = jnp.zeros_like(sqcol_ref)

    @pl.when(phase == 0)
    def _stats():
        x = x_ref[...].astype(jnp.float32)
        if ragged:
            # Last tile extends past N; its out-of-bounds rows hold stale VMEM data.
            # Zero them so they do not contribute to the sums (NaN-safe via where).
            rows = t * tm + jax.lax.broadcasted_iota(jnp.int32, (tm, 1), 0)
            x = jnp.where(rows < n_rows, x, 0.0)
        col_ref[...] += jnp.sum(x, axis=0, keepdims=True)          # (1, D)
        sqcol_ref[...] += jnp.sum(x * x, axis=0, keepdims=True)    # (1, D)

    @pl.when(jnp.logical_and(phase == 0, t == nt - 1))
    def _finalize():
        inv_n = jnp.float32(1.0 / n_rows)
        col_mean = col_ref[...] * inv_n                            # (1, D)
        col_ref[...] = col_mean
        # mean over rows of sum_j (x_ij - mean_j)^2
        #   = (1/N) * sum_ij x_ij^2 - sum_j mean_j^2   (clamped >= 0 for safety)
        mean_sq = jnp.sum(sqcol_ref[...], axis=1, keepdims=True) * inv_n      # (1, 1)
        mean_of_means = jnp.sum(col_mean * col_mean, axis=1, keepdims=True)   # (1, 1)
        var = jnp.maximum(mean_sq - mean_of_means, 0.0)
        inv_ref[...] = jax.lax.rsqrt(var + jnp.float32(1e-6))

    @pl.when(phase == 1)
    def _normalize():
        x = x_ref[...].astype(jnp.float32)
        xc = x - col_ref[...]
        # Ragged-tile OOB rows produce garbage here; Pallas discards OOB output writes.
        o_ref[...] = (xc * inv_ref[...]).astype(o_ref.dtype)


def pair_norm(x, *, tm=None):
    """PairNorm for a (N, D) feature matrix.  Returns same shape/dtype as x."""
    n, d = x.shape
    itemsize = x.dtype.itemsize

    # Generation-aware VMEM budget (v7x: 64 MiB physical, v5e/v6e: 128 MiB).
    vmem_cap = 64 * 1024 * 1024
    try:
        vmem_cap = int(pltpu.get_tpu_info().vmem_capacity_bytes)
    except Exception:
        pass
    vmem_limit = min(vmem_cap * 3 // 4, 128 * 1024 * 1024)

    # VMEM footprint of one (tm, D) tile: lanes pad to 128 internally.
    d_vmem = ((d + 127) // 128) * 128
    bytes_per_row = d_vmem * itemsize
    # ~65% of the scoped limit for the 4 double-buffered (2x in, 2x out) tiles.
    tile_budget = (vmem_limit * 13) // 20
    tm_cap = max(8, (tile_budget // (4 * bytes_per_row)) // 8 * 8)

    if tm is None:
        if n <= tm_cap:
            # Whole-array-resident fast path: nt == 1 => x is DMA'd in exactly once
            # and reused for phase 1 (1 read + 1 write of HBM total).
            tm = n
        else:
            # Streaming path: target ~8 MiB tiles to amortize per-grid-step overhead.
            tm_target = max(8, ((8 * 1024 * 1024) // bytes_per_row) // 8 * 8)
            tm = min(tm_cap, tm_target)
    else:
        tm = max(8, (int(tm) // 8) * 8)
        if tm >= n:
            tm = n

    nt = pl.cdiv(n, tm)
    ragged = (n % tm) != 0

    kernel = functools.partial(_pair_norm_kernel, n_rows=n, ragged=ragged)

    return pl.pallas_call(
        kernel,
        out_shape=jax.ShapeDtypeStruct((n, d), x.dtype),
        grid_spec=pltpu.PrefetchScalarGridSpec(
            num_scalar_prefetch=0,
            grid=(2, nt),  # (phase, row tile); phase is the outer (slow) axis
            in_specs=[pl.BlockSpec((tm, d), lambda p, t: (t, 0))],
            # Phase 0 pins the output block to tile 0 (never written -> stays resident,
            # no garbage writeback since writeback only happens on index change / grid
            # end, by which time phase 1 has overwritten it); phase 1 sweeps all tiles.
            out_specs=pl.BlockSpec((tm, d), lambda p, t: (p * t, 0)),
            scratch_shapes=[
                pltpu.VMEM((1, d), jnp.float32),  # col sums -> col_mean
                pltpu.VMEM((1, d), jnp.float32),  # per-feature sum of squares
                pltpu.VMEM((1, 1), jnp.float32),  # inv rownorm_mean
            ],
        ),
        compiler_params=pltpu.CompilerParams(
            dimension_semantics=("arbitrary", "arbitrary"),
            vmem_limit_bytes=int(vmem_limit),
        ),
    )(x)


def pair_norm_ref(x):
    # Pure-JAX reference mirroring the PyTorch forward.
    col_mean = x.mean(axis=0)
    xc = x - col_mean
    rownorm_mean = jnp.sqrt(1e-6 + (xc ** 2).sum(axis=1).mean())
    return xc / rownorm_mean


if __name__ == "__main__":
    key = jax.random.PRNGKey(0)
    k1, k2, k3 = jax.random.split(key, 3)

    # Small graph: whole-array-resident fast path, unaligned feature width (no padding).
    x1 = jax.random.normal(k1, (8, 32), dtype=jnp.float32)
    out1 = jax.block_until_ready(pair_norm(x1))
    ref1 = pair_norm_ref(x1)
    assert out1.shape == x1.shape and out1.dtype == x1.dtype
    assert jnp.allclose(out1, ref1, atol=1e-4, rtol=1e-4)

    # Streaming two-phase path with a ragged last row tile (200 rows, tm=64 -> 4 tiles,
    # last tile has 8 valid rows) and an unaligned feature width (48).
    x2 = jax.random.normal(k2, (200, 48), dtype=jnp.float32)
    out2 = jax.block_until_ready(pair_norm(x2, tm=64))
    ref2 = pair_norm_ref(x2)
    assert out2.shape == x2.shape and out2.dtype == x2.dtype
    assert jnp.allclose(out2, ref2, atol=1e-4, rtol=1e-4)

    # Streaming path with exactly-dividing tiles (256 rows, tm=64 -> 4 full tiles).
    x3 = jax.random.normal(k3, (256, 64), dtype=jnp.float32)
    out3 = jax.block_until_ready(pair_norm(x3, tm=64))
    ref3 = pair_norm_ref(x3)
    assert out3.shape == x3.shape and out3.dtype == x3.dtype
    assert jnp.allclose(out3, ref3, atol=1e-4, rtol=1e-4)

    print("KERNEL_OK")
</pallas_src>

<mosaic_0001>
module attributes {stable_mosaic.version = 11 : i64} {
  func.func @_pair_norm_kernel(%arg0: i32, %arg1: i32, %arg2: memref<8x32xf32, #tpu.memory_space<vmem>>, %arg3: memref<8x32xf32, #tpu.memory_space<vmem>>, %arg4: memref<1x32xf32, #tpu.memory_space<vmem>>, %arg5: memref<1x32xf32, #tpu.memory_space<vmem>>, %arg6: memref<1x1xf32, #tpu.memory_space<vmem>>) attributes {dimension_semantics = [#tpu.dimension_semantics<arbitrary>, #tpu.dimension_semantics<arbitrary>], iteration_bounds = array<i64: 2, 1>, scalar_prefetch = 0 : i64, scratch_operands = 3 : i64, tpu.core_type = #tpu.core_type<tc>, window_params = [{transform_indices = @transform_0, window_bounds = array<i64: 8, 32>}, {transform_indices = @transform_1, window_bounds = array<i64: 8, 32>}]} {
    %c0_i32 = arith.constant 0 : i32
    %0 = arith.cmpi eq, %arg0, %c0_i32 : i32
    %c0_i32_0 = arith.constant 0 : i32
    %1 = arith.cmpi eq, %arg1, %c0_i32_0 : i32
    %2 = arith.andi %0, %1 : i1
    %3 = arith.extui %2 : i1 to i32
    %c0_i32_1 = arith.constant 0 : i32
    %4 = arith.cmpi ne, %3, %c0_i32_1 : i32
    scf.if %4 {
      %cst = arith.constant 0.000000e+00 : f32
      %16 = vector.broadcast %cst : f32 to vector<1x32xf32>
      %c0 = arith.constant 0 : index
      %c0_8 = arith.constant 0 : index
      %17 = vector.load %arg4[%c0, %c0_8] : memref<1x32xf32, #tpu.memory_space<vmem>>, vector<1x32xf32>
      tpu.vector_store %arg4[%c0, %c0_8], %16 {strides = array<i32>} : memref<1x32xf32, #tpu.memory_space<vmem>>, vector<1x32xf32>,
      %cst_9 = arith.constant 0.000000e+00 : f32
      %18 = vector.broadcast %cst_9 : f32 to vector<1x32xf32>
      %c0_10 = arith.constant 0 : index
      %c0_11 = arith.constant 0 : index
      %19 = vector.load %arg5[%c0_10, %c0_11] : memref<1x32xf32, #tpu.memory_space<vmem>>, vector<1x32xf32>
      tpu.vector_store %arg5[%c0_10, %c0_11], %18 {strides = array<i32>} : memref<1x32xf32, #tpu.memory_space<vmem>>, vector<1x32xf32>,
    } else {
    }
    %c0_i32_2 = arith.constant 0 : i32
    %5 = arith.cmpi eq, %arg0, %c0_i32_2 : i32
    %6 = arith.extui %5 : i1 to i32
    %c0_i32_3 = arith.constant 0 : i32
    %7 = arith.cmpi ne, %6, %c0_i32_3 : i32
    scf.if %7 {
      %c0 = arith.constant 0 : index
      %c0_8 = arith.constant 0 : index
      %16 = vector.load %arg2[%c0, %c0_8] : memref<8x32xf32, #tpu.memory_space<vmem>>, vector<8x32xf32>
      %c0_9 = arith.constant 0 : index
      %c0_10 = arith.constant 0 : index
      %17 = vector.load %arg4[%c0_9, %c0_10] : memref<1x32xf32, #tpu.memory_space<vmem>>, vector<1x32xf32>
      %cst = arith.constant dense<0.000000e+00> : vector<32xf32>
      %18 = vector.multi_reduction <add>, %16, %cst [0] : vector<8x32xf32> to vector<32xf32>
      %19 = vector.shape_cast %18 : vector<32xf32> to vector<1x32xf32>
      %20 = arith.addf %17, %19 : vector<1x32xf32>
      %c0_11 = arith.constant 0 : index
      %c0_12 = arith.constant 0 : index
      %21 = vector.load %arg4[%c0_11, %c0_12] : memref<1x32xf32, #tpu.memory_space<vmem>>, vector<1x32xf32>
      tpu.vector_store %arg4[%c0_11, %c0_12], %20 {strides = array<i32>} : memref<1x32xf32, #tpu.memory_space<vmem>>, vector<1x32xf32>,
      %c0_13 = arith.constant 0 : index
      %c0_14 = arith.constant 0 : index
      %22 = vector.load %arg5[%c0_13, %c0_14] : memref<1x32xf32, #tpu.memory_space<vmem>>, vector<1x32xf32>
      %23 = arith.mulf %16, %16 : vector<8x32xf32>
      %cst_15 = arith.constant dense<0.000000e+00> : vector<32xf32>
      %24 = vector.multi_reduction <add>, %23, %cst_15 [0] : vector<8x32xf32> to vector<32xf32>
      %25 = vector.shape_cast %24 : vector<32xf32> to vector<1x32xf32>
      %26 = arith.addf %22, %25 : vector<1x32xf32>
      %c0_16 = arith.constant 0 : index
      %c0_17 = arith.constant 0 : index
      %27 = vector.load %arg5[%c0_16, %c0_17] : memref<1x32xf32, #tpu.memory_space<vmem>>, vector<1x32xf32>
      tpu.vector_store %arg5[%c0_16, %c0_17], %26 {strides = array<i32>} : memref<1x32xf32, #tpu.memory_space<vmem>>, vector<1x32xf32>,
    } else {
    }
    %c0_i32_4 = arith.constant 0 : i32
    %8 = arith.cmpi eq, %arg0, %c0_i32_4 : i32
    %c0_i32_5 = arith.constant 0 : i32
    %9 = arith.cmpi eq, %arg1, %c0_i32_5 : i32
    %10 = arith.andi %8, %9 : i1
    %11 = arith.extui %10 : i1 to i32
    %c0_i32_6 = arith.constant 0 : i32
    %12 = arith.cmpi ne, %11, %c0_i32_6 : i32
    scf.if %12 {
      %c0 = arith.constant 0 : index
      %c0_8 = arith.constant 0 : index
      %16 = vector.load %arg4[%c0, %c0_8] : memref<1x32xf32, #tpu.memory_space<vmem>>, vector<1x32xf32>
      %cst = arith.constant 1.250000e-01 : f32
      %17 = vector.broadcast %cst : f32 to vector<1x32xf32>
      %18 = arith.mulf %16, %17 : vector<1x32xf32>
      %c0_9 = arith.constant 0 : index
      %c0_10 = arith.constant 0 : index
      %19 = vector.load %arg4[%c0_9, %c0_10] : memref<1x32xf32, #tpu.memory_space<vmem>>, vector<1x32xf32>
      tpu.vector_store %arg4[%c0_9, %c0_10], %18 {strides = array<i32>} : memref<1x32xf32, #tpu.memory_space<vmem>>, vector<1x32xf32>,
      %c0_11 = arith.constant 0 : index
      %c0_12 = arith.constant 0 : index
      %20 = vector.load %arg5[%c0_11, %c0_12] : memref<1x32xf32, #tpu.memory_space<vmem>>, vector<1x32xf32>
      %cst_13 = arith.constant dense<0.000000e+00> : vector<1xf32>
      %21 = vector.multi_reduction <add>, %20, %cst_13 [1] : vector<1x32xf32> to vector<1xf32>
      %22 = vector.shape_cast %21 : vector<1xf32> to vector<1x1xf32>
      %cst_14 = arith.constant 1.250000e-01 : f32
      %23 = vector.broadcast %cst_14 : f32 to vector<1x1xf32>
      %24 = arith.mulf %22, %23 : vector<1x1xf32>
      %25 = arith.mulf %18, %18 : vector<1x32xf32>
      %cst_15 = arith.constant dense<0.000000e+00> : vector<1xf32>
      %26 = vector.multi_reduction <add>, %25, %cst_15 [1] : vector<1x32xf32> to vector<1xf32>
      %27 = vector.shape_cast %26 : vector<1xf32> to vector<1x1xf32>
      %28 = arith.subf %24, %27 : vector<1x1xf32>
      %cst_16 = arith.constant 0.000000e+00 : f32
      %29 = vector.broadcast %cst_16 : f32 to vector<1x1xf32>
      %30 = arith.maximumf %28, %29 : vector<1x1xf32>
      %cst_17 = arith.constant 9.99999997E-7 : f32
      %31 = vector.broadcast %cst_17 : f32 to vector<1x1xf32>
      %32 = arith.addf %30, %31 : vector<1x1xf32>
      %33 = math.rsqrt %32 : vector<1x1xf32>
      %c0_18 = arith.constant 0 : index
      %c0_19 = arith.constant 0 : index
      %34 = vector.load %arg6[%c0_18, %c0_19] : memref<1x1xf32, #tpu.memory_space<vmem>>, vector<1x1xf32>
      tpu.vector_store %arg6[%c0_18, %c0_19], %33 {strides = array<i32>} : memref<1x1xf32, #tpu.memory_space<vmem>>, vector<1x1xf32>,
    } else {
    }
    %c1_i32 = arith.constant 1 : i32
    %13 = arith.cmpi eq, %arg0, %c1_i32 : i32
    %14 = arith.extui %13 : i1 to i32
    %c0_i32_7 = arith.constant 0 : i32
    %15 = arith.cmpi ne, %14, %c0_i32_7 : i32
    scf.if %15 {
      %c0 = arith.constant 0 : index
      %c0_8 = arith.constant 0 : index
      %16 = vector.load %arg2[%c0, %c0_8] : memref<8x32xf32, #tpu.memory_space<vmem>>, vector<8x32xf32>
      %c0_9 = arith.constant 0 : index
      %c0_10 = arith.constant 0 : index
      %17 = vector.load %arg4[%c0_9, %c0_10] : memref<1x32xf32, #tpu.memory_space<vmem>>, vector<1x32xf32>
      %18 = vector.broadcast %17 : vector<1x32xf32> to vector<8x32xf32>
      %19 = arith.subf %16, %18 : vector<8x32xf32>
      %c0_11 = arith.constant 0 : index
      %c0_12 = arith.constant 0 : index
      %20 = vector.load %arg6[%c0_11, %c0_12] : memref<1x1xf32, #tpu.memory_space<vmem>>, vector<1x1xf32>
      %21 = vector.broadcast %20 : vector<1x1xf32> to vector<8x32xf32>
      %22 = arith.mulf %19, %21 : vector<8x32xf32>
      %c0_13 = arith.constant 0 : index
      %c0_14 = arith.constant 0 : index
      %23 = vector.load %arg3[%c0_13, %c0_14] : memref<8x32xf32, #tpu.memory_space<vmem>>, vector<8x32xf32>
      tpu.vector_store %arg3[%c0_13, %c0_14], %22 {strides = array<i32>} : memref<8x32xf32, #tpu.memory_space<vmem>>, vector<8x32xf32>,
    } else {
    }
    return
  }
  func.func @transform_0(%arg0: i32, %arg1: i32) -> (i32, i32) {
    %c0_i32 = arith.constant 0 : i32
    %c0_i32_0 = arith.constant 0 : i32
    return %arg1, %c0_i32 : i32, i32
  }
  func.func @transform_1(%arg0: i32, %arg1: i32) -> (i32, i32) {
    %0 = arith.muli %arg0, %arg1 : i32
    %c0_i32 = arith.constant 0 : i32
    %c0_i32_0 = arith.constant 0 : i32
    return %0, %c0_i32 : i32, i32
  }
}

</mosaic_0001>

<llo_original>
// kernel: tpu_custom_call.1
$region0: #{tpu_custom_call.1}
  #allocation0 [shape = 'u32[]', space=smem, size = 0x4, offset = 0x4, fixed_abs, tag = 'smem constant byte address 0x4 - core index']
  #allocation1 [shape = 'u32[144,128]{1,0:T(1,128)}', space=vmem, size = 0x12000, scoped, tag = 'internal scratch']
  #allocation2 [shape = 'f32[1,32]{1,0:T(1,128)}', space=vmem, size = 0x200, scoped, tag = 'scratch operand']
  #allocation3 [shape = 'f32[1,32]{1,0:T(1,128)}', space=vmem, size = 0x200, scoped, tag = 'scratch operand']
  #allocation4 [shape = 'f32[1,1]{1,0:T(1,128)}', space=vmem, size = 0x200, scoped, tag = 'scratch operand']
  %s0 = inlined_call_operand.hbm [shape: f32[8,32], index: 0, kind: input, shape index: {}]
  %s1 = inlined_call_operand.hbm [shape: f32[8,32], index: 1, kind: output, shape index: {}]
  %s2 = sld [smem:[#allocation0]]
  $region57: #{tpu_custom_call.1} parent=0
    _
  %s4 = ssub.s32 1, %s2
  %s5 = scalar_select 0, %s4, %s2
  $region1: #{tpu_custom_call.1} parent=0
    #allocation5 [shape = 'u8[4096]{0}', space=vmem, size = 0x1000, scoped, tag = 'input window, operand 0, single buffered']
    #allocation6 [shape = 's32[2]{0}', space=sflag, size = 0x8, scoped, tag = 'scoped memory for tpu_custom_call.1']
    #allocation7 [shape = 's32[2]{0}', space=sflag, size = 0x8, scoped, tag = 'scoped memory for tpu_custom_call.1']
    #allocation8 [shape = 'u8[8192]{0}', space=vmem, size = 0x2000, scoped, tag = 'output window, operand 0']
    %6 = vsyncpa [#allocation6], 0
    %7 = vsyncpa [#allocation7], 0
    %s8 = scalar_lea.sflag [#allocation7], 1
    %9 = vsyncpa %s8, 0
    loop: start=0, step=1, limit=4
    $region2: #{tpu_custom_call.1} parent=1 // loop_pre_header
      _
    $region3: #{tpu_custom_call.1} parent=1 // loop_header
      %s11 = sphi 0, %s15
      %p12 = scmp.ge.s32.totalorder %s11, 4
      %s18 = sphi 0, %s30
      %s19 = sphi 0, %s26
      %s20 = sphi 0, %s18
      %s21 = sphi 0, %s19
      %s22 = sphi 0, %s20
      %s23 = sphi 0, %s21
      %s33 = sphi 0, %s35
      %s36 = sphi 0, %s33
      %s37 = sphi 0, %s36
      %s53 = sphi 0, %s37
      %s61 = sphi 0, %s63
      %s64 = sphi 0, %s61
      %s65 = sphi 0, %s64
      %s81 = sphi 0, %s65
    $region4: #{tpu_custom_call.1} parent=1 // loop_header_branch
      %14 = sbr.rel (%p12) target = $region8
    $region5: #{tpu_custom_call.1} parent=1 // loop_body
      %s16 = ssub.s32 %s11, 1
      %s17 = ssub.s32 %s11, 2
      %s24 = sadd.s32 1, %s19
      %p25 = scmp.ge.s32.totalorder %s24, 1
      %s26 = scalar_select %p25, 0, %s24
      %s27 = sadd.s32 1, %s18
      %s28 = scalar_select %p25, %s27, %s18
      %p29 = scmp.ge.s32.totalorder %s28, 2
      %s30 = scalar_select %p29, 0, %s28
      %s31 = ssub.s32 %s19, %s26
      %p32 = scmp.eq.s32.totalorder %s31, 0
      %s34 = sadd.s32 %s33, 1
      %s35 = scalar_select %p32, %s33, %s34
      %p38 = pneg %p32
      %p39 = scmp.eq.s32.totalorder %s11, 1
      %p40 = por %p38, %p39
      %p41 = scmp.ne.s32.totalorder %s33, %s36
      %p42 = scmp.eq.s32.totalorder %s11, 0
      %p43 = por %p41, %p42
      %p44 = scmp.ne.s32.totalorder %s33, %s36
      %p45 = scmp.eq.s32.totalorder %s16, 1
      %p46 = por %p44, %p45
      %p47 = scmp.ne.s32.totalorder %s36, %s37
      %p48 = scmp.eq.s32.totalorder %s16, 0
      %p49 = por %p47, %p48
      %p50 = scmp.ne.s32.totalorder %s36, %s37
      %p51 = scmp.eq.s32.totalorder %s17, 1
      %p52 = por %p50, %p51
      %p54 = scmp.ne.s32.totalorder %s37, %s53
      %p55 = scmp.eq.s32.totalorder %s17, 0
      %p56 = por %p54, %p55
      %s57 = smul.u32 %s18, %s19
      %s58 = smul.u32 %s30, %s26
      %s59 = ssub.s32 %s57, %s58
      %p60 = scmp.eq.s32.totalorder %s59, 0
      %s62 = sadd.s32 %s61, 1
      %s63 = scalar_select %p60, %s61, %s62
      %p66 = pneg %p60
      %p67 = scmp.eq.s32.totalorder %s11, 1
      %p68 = por %p66, %p67
      %p69 = scmp.ne.s32.totalorder %s61, %s64
      %p70 = scmp.eq.s32.totalorder %s11, 0
      %p71 = por %p69, %p70
      %p72 = scmp.ne.s32.totalorder %s61, %s64
      %p73 = scmp.eq.s32.totalorder %s16, 1
      %p74 = por %p72, %p73
      %p75 = scmp.ne.s32.totalorder %s64, %s65
      %p76 = scmp.eq.s32.totalorder %s16, 0
      %p77 = por %p75, %p76
      %p78 = scmp.ne.s32.totalorder %s64, %s65
      %p79 = scmp.eq.s32.totalorder %s17, 1
      %p80 = por %p78, %p79
      %p82 = scmp.ne.s32.totalorder %s65, %s81
      %p83 = scmp.eq.s32.totalorder %s17, 0
      %p84 = por %p82, %p83
      %p85 = scmp.le.s32.totalorder 1, %s11
      %p86 = scmp.lt.s32.totalorder %s11, 3
      %p87 = pnand %p85, %p86
      %p88 = pneg %p87
      // Predicated region
      $region9: #{tpu_custom_call.1} parent=5 // pred_check
        _
      $region10: #{tpu_custom_call.1} parent=5 // pred_check_branch
        %90 = sbr.rel (%p87) target = $region12
      $region11: #{tpu_custom_call.1} parent=5 // pred_region
        %s91 = ssub.s32 %s11, 1
        // Predicated region
        $region13: #{tpu_custom_call.1} parent=11 // pred_check
          %p92 = pneg %p49
        $region14: #{tpu_custom_call.1} parent=11 // pred_check_branch
          %94 = sbr.rel (%p92) target = $region16
        $region15: #{tpu_custom_call.1} parent=11 // pred_region
          %s96 = ssub.s32 128, 128
          %97 = vsyncadd [#allocation6], %s96
          %s98 = smul.addr %s21, 128
          %s99 = scalar_lea.hbm %s0, %s98
          %s101 = sshll.u32 [#allocation5], 4
          %s102 = int_to_ptr.vmem [resolvable:$true] %s101
          %104 = dma.hbm_to_vmem [thread:$0]  %s99, 128, %s102, [#allocation6]
        $region16: #{tpu_custom_call.1} parent=11 // pred_fallthru
          _
      $region12: #{tpu_custom_call.1} parent=5 // pred_fallthru
        _
      %p105 = scmp.lt.s32.totalorder %s11, 2
      // Predicated region
      $region17: #{tpu_custom_call.1} parent=5 // pred_check
        %p106 = pneg %p105
      $region18: #{tpu_custom_call.1} parent=5 // pred_check_branch
        %108 = sbr.rel (%p106) target = $region20
      $region19: #{tpu_custom_call.1} parent=5 // pred_region
        _
      $region20: #{tpu_custom_call.1} parent=5 // pred_fallthru
        _
      %p109 = scmp.le.s32.totalorder 1, %s11
      %p110 = scmp.lt.s32.totalorder %s11, 3
      %p111 = pnand %p109, %p110
      %p112 = pneg %p111
      // Predicated region
      $region21: #{tpu_custom_call.1} parent=5 // pred_check
        _
      $region22: #{tpu_custom_call.1} parent=5 // pred_check_branch
        %114 = sbr.rel (%p111) target = $region24
      $region23: #{tpu_custom_call.1} parent=5 // pred_region
        %s115 = ssub.s32 %s11, 1
        // Predicated region
        $region25: #{tpu_custom_call.1} parent=23 // pred_check
          %p116 = pneg %p49
        $region26: #{tpu_custom_call.1} parent=23 // pred_check_branch
          %118 = sbr.rel (%p116) target = $region28
        $region27: #{tpu_custom_call.1} parent=23 // pred_region
          %119 = dma.done [#allocation6], 128
        $region28: #{tpu_custom_call.1} parent=23 // pred_fallthru
          _
        %p120 = pneg %p49
        %p121 = pneg %p46
        %p122 = pneg %p77
        %p123 = pneg %p74
        %s124 = sand.u32 %s64, 1
        %s125 = scalar_lea.sflag [#allocation7], %s124
        %s126 = sand.u32 %s64, 1
        %s127 = smul.addr %s126, 8
        %s128 = scalar_lea.vmem [#allocation8], %s127
        %s129 = smul.u32 %s20, %s21
        %p130 = scmp.eq.s32.totalorder %s20, 0
        %p131 = scmp.eq.s32.totalorder %s21, 0
        %p132 = pnand %p130, %p131
        %p133 = pneg %p132
        // Predicated region
        $region29: #{tpu_custom_call.1} parent=23 // pred_check
          _
        $region30: #{tpu_custom_call.1} parent=23 // pred_check_branch
          %135 = sbr.rel (%p132) target = $region32
        $region31: #{tpu_custom_call.1} parent=23 // pred_region
          %vm136 = vcmask 253952
          %137 = vst.msk [vmem:[#allocation2] sm:$0x1] %vm136, 0.0
          %138 = vst.msk [vmem:[#allocation3] sm:$0x1] %vm136, 0.0
        $region32: #{tpu_custom_call.1} parent=23 // pred_fallthru
          _
        // Predicated region
        $region33: #{tpu_custom_call.1} parent=23 // pred_check
          %p139 = pneg %p130
        $region34: #{tpu_custom_call.1} parent=23 // pred_check_branch
          %141 = sbr.rel (%p139) target = $region36
        $region35: #{tpu_custom_call.1} parent=23 // pred_region
          %v142 = vld [vmem:[#allocation5] sm:$0xff]
          %v143 = vld [vmem:[#allocation2] sm:$0x1]
          %vm144 = vcmask 261120
          %v145 = vsel %vm144, %v142, 0.0
          %v146 = vrot.slane %v145, 4
          %v147 = vadd.f32 %v145, %v146
          %v148 = vrot.slane %v147, 2
          %v149 = vadd.f32 %v147, %v148
          %v150 = vrot.slane %v149, 1
          %v151 = vadd.f32 %v149, %v150
          %v152 = vadd.f32 %v143, %v151
          %vm153 = vcmask 253952
          %154 = vst.msk [vmem:[#allocation2] sm:$0x1] %vm153, %v152
          %v155 = vld [vmem:[#allocation3] sm:$0x1]
          %v156 = vmul.f32 %v142, %v142
          %v157 = vsel %vm144, %v156, 0.0
          %v158 = vrot.slane %v157, 4
          %v159 = vadd.f32 %v157, %v158
          %v160 = vrot.slane %v159, 2
          %v161 = vadd.f32 %v159, %v160
          %v162 = vrot.slane %v161, 1
          %v163 = vadd.f32 %v161, %v162
          %v164 = vadd.f32 %v155, %v163
          %165 = vst.msk [vmem:[#allocation3] sm:$0x1] %vm153, %v164
        $region36: #{tpu_custom_call.1} parent=23 // pred_fallthru
          _
        // Predicated region
        $region37: #{tpu_custom_call.1} parent=23 // pred_check
          _
        $region38: #{tpu_custom_call.1} parent=23 // pred_check_branch
          %167 = sbr.rel (%p132) target = $region40
        $region39: #{tpu_custom_call.1} parent=23 // pred_region
          %v168 = vld [vmem:[#allocation2] sm:$0x1]
          %v169 = vmul.f32 %v168, 0.125
          %vm170 = vcmask 253952
          %171 = vst.msk [vmem:[#allocation2] sm:$0x1] %vm170, %v169
          %v172 = vld [vmem:[#allocation3] sm:$0x1]
          %v173 = vsel %vm170, %v172, 0.0
          %174 = vadd.xlane.f32.xlu0 %v173
          %v175 = vpop.xlane.xlu0 %174
          %v176 = vmul.f32 %v175, 0.125
          %v177 = vmul.f32 %v169, %v169
          %v178 = vsel %vm170, %v177, 0.0
          %179 = vadd.xlane.f32.xlu0 %v178
          %v180 = vpop.xlane.xlu0 %179
          %v181 = vsub.f32 %v176, %v180
          %v182 = vmax.f32 %v181, 0.0
          %v183 = vadd.f32 %v182, 1e-06
          %v184 = vrsqrt.pop %v183
          %vm185 = vcmask 0
          %186 = vst.msk [vmem:[#allocation4] sm:$0x1] %vm185, %v184
        $region40: #{tpu_custom_call.1} parent=23 // pred_fallthru
          _
        %p187 = scmp.eq.s32.totalorder %s20, 1
        // Predicated region
        $region41: #{tpu_custom_call.1} parent=23 // pred_check
          %p188 = pneg %p187
        $region42: #{tpu_custom_call.1} parent=23 // pred_check_branch
          %190 = sbr.rel (%p188) target = $region44
        $region43: #{tpu_custom_call.1} parent=23 // pred_region
          %v191 = vld [vmem:[#allocation5] sm:$0xff]
          %v192 = vld [vmem:[#allocation2] sm:$0x1]
          %v194 = vlaneseq
          %v195 = vshrl.u32 %v194, 7
          %v196 = vsub.s32 0, %v195
          %v197 = vrot.slane %v192, %v196
          %v199 = vsub.f32 %v191, %v197
          %v200 = vld [vmem:[#allocation4] sm:$0x1]
          %v202 = vlaneseq
          %v203 = vshrl.u32 %v202, 7
          %v204 = vsub.s32 0, %v203
          %v205 = vrot.slane %v200, %v204
          %206 = vset.pattern.permute.xlu0 0
          %207 = vperm.xlu0 %206, %v205
          %v208 = vpop.permute.xlu0 %207
          %v210 = vmul.f32 %v199, %v208
          %vm211 = vcmask 261120
          %212 = vst.msk [vmem:[%s128] sm:$0xff] %vm211, %v210
        $region44: #{tpu_custom_call.1} parent=23 // pred_fallthru
          _
        %s213 = sand.u32 %s64, 1
        %s214 = scalar_lea.sflag [#allocation7], %s213
        %s215 = sand.u32 %s64, 1
        %s216 = smul.addr %s215, 8
        %s217 = scalar_lea.vmem [#allocation8], %s216
        // Predicated region
        $region45: #{tpu_custom_call.1} parent=23 // pred_check
          %p218 = pneg %p74
        $region46: #{tpu_custom_call.1} parent=23 // pred_check_branch
          %220 = sbr.rel (%p218) target = $region48
        $region47: #{tpu_custom_call.1} parent=23 // pred_region
          %s221 = smul.u32 %s20, %s21
          %s223 = ssub.s32 128, 128
          %224 = vsyncadd %s214, %s223
          %s225 = smul.addr %s221, 128
          %s226 = scalar_lea.hbm %s1, %s225
          %s228 = sshll.u32 %s217, 4
          %s229 = int_to_ptr.vmem [resolvable:$true] %s228
          %231 = dma.vmem_to_hbm [thread:$0]  %s229, 128, %s226, %s214
        $region48: #{tpu_custom_call.1} parent=23 // pred_fallthru
          _
      $region24: #{tpu_custom_call.1} parent=5 // pred_fallthru
        _
      %p232 = scmp.le.s32.totalorder 2, %s11
      // Predicated region
      $region49: #{tpu_custom_call.1} parent=5 // pred_check
        %p233 = pneg %p232
      $region50: #{tpu_custom_call.1} parent=5 // pred_check_branch
        %235 = sbr.rel (%p233) target = $region52
      $region51: #{tpu_custom_call.1} parent=5 // pred_region
        %s236 = ssub.s32 %s11, 2
        // Predicated region
        $region53: #{tpu_custom_call.1} parent=51 // pred_check
          %p237 = pneg %p80
        $region54: #{tpu_custom_call.1} parent=51 // pred_check_branch
          %239 = sbr.rel (%p237) target = $region56
        $region55: #{tpu_custom_call.1} parent=51 // pred_region
          %s240 = sand.u32 %s65, 1
          %s241 = scalar_lea.sflag [#allocation7], %s240
          %s242 = sand.u32 %s65, 1
          %s243 = smul.addr %s242, 8
          %s244 = scalar_lea.vmem [#allocation8], %s243
          %245 = dma.done %s241, 128
        $region56: #{tpu_custom_call.1} parent=51 // pred_fallthru
          _
      $region52: #{tpu_custom_call.1} parent=5 // pred_fallthru
        _
    $region6: #{tpu_custom_call.1} parent=1 // loop_footer
      %s15 = sadd.s32 1, %s11
    $region7: #{tpu_custom_call.1} parent=1 // loop_footer_branch
      %10 = sbr.rel target = $region3
    $region8: #{tpu_custom_call.1} parent=1 // loop_exit
      _
    %246 = vsyncpa [#allocation6], 1
    %s247 = scalar_lea.sflag [#allocation6], 1
    %248 = vsyncpa %s247, 1
    %249 = vsyncpa [#allocation7], 1
    %s250 = scalar_lea.sflag [#allocation7], 1
    %251 = vsyncpa %s250, 1

</llo_original>
